<compile_context>
chip_gen: v6e
topology: v6e:2x2x1
jax: 0.10.0
libtpu: 0.0.40
codegen_flags: <defaults>
</compile_context>

<pallas_src>
import functools
import math

import jax
import jax.numpy as jnp
from jax import lax
from jax.experimental import pallas as pl
from jax.experimental.pallas import tpu as pltpu


def _round_up(x, m):
    return (x + m - 1) // m * m


def _pick_tile(dim, align, cap):
    """Largest tile <= cap (multiple of `align`) that minimizes padding of `dim`."""
    d = _round_up(dim, align)
    if d <= cap:
        return d
    best_t, best_pad = align, None
    t = (cap // align) * align
    while t >= align:
        pad = _round_up(d, t) - d
        if best_pad is None or pad < best_pad:
            best_t, best_pad = t, pad
        if pad == 0:
            break
        t -= align
    return best_t


def _lora_linear_kernel(x_ref, w_ref, b_ref, xa_ref, lb_ref, o_ref, acc_ref):
    """One (tm, tn) output tile, reduced over the K grid axis.

    x_ref  : [tm, tk]       activation tile
    w_ref  : [tn, tk]       base weight tile (contract last axes, no .T)
    b_ref  : [1,  tn]       bias tile
    xa_ref : [tm, r_pad]    pre-scaled (x @ A.T) * scale tile (K-invariant)
    lb_ref : [tn, r_pad]    lora_B tile (K-invariant)
    o_ref  : [tm, tn]       output tile
    acc_ref: [tm, tn] f32   accumulator (VMEM scratch), init'd with the bias
    """
    k = pl.program_id(2)
    contract_last = (((1,), (1,)), ((), ()))  # x[M,K] . Y[N,K] -> [M,N]

    @pl.when(k == 0)
    def _():
        # Fold the bias into the accumulator init: saves a [tm, tn] VALU add
        # and a broadcast in the finalize tail.
        acc_ref[...] = jnp.broadcast_to(
            b_ref[...].astype(jnp.float32), acc_ref.shape)

    # Base path: x @ W.T, f32 accumulation on the MXU.
    acc_ref[...] += lax.dot_general(
        x_ref[...], w_ref[...], contract_last,
        preferred_element_type=jnp.float32)

    @pl.when(k == pl.num_programs(2) - 1)
    def _():
        # Single low-rank matmul per output tile; xa is already scaled.
        lora = lax.dot_general(
            xa_ref[...], lb_ref[...], contract_last,
            preferred_element_type=jnp.float32)
        o_ref[...] = (acc_ref[...] + lora).astype(o_ref.dtype)


def lora_linear(x, weight, bias, lora_A, lora_B, *, lora_alpha=1, r=4):
    """y = x @ W.T + bias + (x @ A.T @ B.T) * (lora_alpha / r).

    x: [..., in_features] -> [..., out_features].
    Works for float32 or bfloat16 inputs (f32 accumulation either way).
    """
    out_features, in_features = weight.shape
    lead = x.shape[:-1]
    M = math.prod(lead) if lead else 1
    x2d = x.reshape(M, in_features)

    if bias is None:
        bias = jnp.zeros((out_features,), dtype=x.dtype)
    bias2d = bias.reshape(1, out_features)

    scale = float(lora_alpha) / float(r)

    # LoRA stage 1 hoisted out of the kernel: a tiny [M, r] matmul. Doing it
    # in-kernel at r_pad = 128 would inflate MXU work per K step and would be
    # recomputed once per N tile.
    xa = lax.dot_general(
        x2d, lora_A, (((1,), (1,)), ((), ())),
        precision=lax.Precision.HIGHEST,
        preferred_element_type=jnp.float32) * scale
    xa = xa.astype(x.dtype)

    itemsize = jnp.dtype(x.dtype).itemsize
    sublane = max(8, 8 * 4 // max(itemsize, 1))  # 8 (f32), 16 (bf16), 32 (int8)

    tm = _pick_tile(M, sublane, 512)
    tn = _pick_tile(out_features, 128, 512)
    tk = _pick_tile(in_features, 128, 1024)
    r_pad = _round_up(r, 128)

    M_pad = _round_up(M, tm)
    N_pad = _round_up(out_features, tn)
    K_pad = _round_up(in_features, tk)

    # Pad only when actually needed (a jnp.pad of a large W/x is an extra HBM
    # read+write per call outside the kernel). Zero padding is exact: padded
    # K/r contribute 0; padded M/N rows/cols are sliced off below.
    if (M_pad, K_pad) != (M, in_features):
        x2d = jnp.pad(x2d, ((0, M_pad - M), (0, K_pad - in_features)))
    if (N_pad, K_pad) != (out_features, in_features):
        weight = jnp.pad(weight, ((0, N_pad - out_features),
                                  (0, K_pad - in_features)))
    if N_pad != out_features:
        bias2d = jnp.pad(bias2d, ((0, 0), (0, N_pad - out_features)))
    if (M_pad, r_pad) != (M, r):
        xa = jnp.pad(xa, ((0, M_pad - M), (0, r_pad - r)))
    if (N_pad, r_pad) != (out_features, r):
        lora_B = jnp.pad(lora_B, ((0, N_pad - out_features), (0, r_pad - r)))

    grid = (M_pad // tm, N_pad // tn, K_pad // tk)

    bytes_accessed = (
        M_pad * K_pad * itemsize            # x
        + N_pad * K_pad * itemsize          # W
        + M_pad * r_pad * itemsize          # xa
        + N_pad * r_pad * itemsize          # lora_B
        + N_pad * itemsize                  # bias
        + M_pad * N_pad * itemsize)         # out

    out_p = pl.pallas_call(
        _lora_linear_kernel,
        out_shape=jax.ShapeDtypeStruct((M_pad, N_pad), x.dtype),
        grid_spec=pltpu.PrefetchScalarGridSpec(
            num_scalar_prefetch=0,
            grid=grid,
            in_specs=[
                pl.BlockSpec((tm, tk), lambda i, j, k: (i, k)),       # x
                pl.BlockSpec((tn, tk), lambda i, j, k: (j, k)),       # W
                pl.BlockSpec((1, tn), lambda i, j, k: (0, j)),        # bias
                pl.BlockSpec((tm, r_pad), lambda i, j, k: (i, 0)),    # xa (pre-scaled)
                pl.BlockSpec((tn, r_pad), lambda i, j, k: (j, 0)),    # lora_B
            ],
            out_specs=pl.BlockSpec((tm, tn), lambda i, j, k: (i, j)),
            scratch_shapes=[
                pltpu.VMEM((tm, tn), jnp.float32),     # base-path accumulator
            ],
        ),
        compiler_params=pltpu.CompilerParams(
            dimension_semantics=("parallel", "parallel", "arbitrary"),
            vmem_limit_bytes=48 * 1024 * 1024,
        ),
        cost_estimate=pl.CostEstimate(
            flops=2 * M_pad * N_pad * (K_pad + r_pad),
            transcendentals=0,
            bytes_accessed=bytes_accessed,
        ),
    )(x2d, weight, bias2d, xa, lora_B)

    out = out_p[:M, :out_features]
    return out.reshape(*lead, out_features)


if __name__ == "__main__":
    # Small shapes: batch=2, seq=8, in_features=32, out_features=32, r=4.
    batch, seq = 2, 8
    in_features, out_features, r, lora_alpha = 32, 32, 4, 1

    key = jax.random.PRNGKey(0)
    kx, kw, kb, ka, kB = jax.random.split(key, 5)

    x = jax.random.normal(kx, (batch, seq, in_features), dtype=jnp.float32)
    # Deterministic synthetic parameters (nonzero so the kernel does real work;
    # the torch module zero-inits W/B so its forward would be trivially bias-only).
    weight = jax.random.normal(kw, (out_features, in_features), jnp.float32) * 0.1
    bias = jax.random.normal(kb, (out_features,), jnp.float32) * 0.1
    lora_A = jax.random.normal(ka, (r, in_features), jnp.float32) * 0.1
    lora_B = jax.random.normal(kB, (out_features, r), jnp.float32) * 0.1

    out = lora_linear(x, weight, bias, lora_A, lora_B,
                      lora_alpha=lora_alpha, r=r)
    out = jax.block_until_ready(out)

    # Pure-JAX reference (full f32 matmul precision for a fair comparison).
    with jax.default_matmul_precision("highest"):
        ref = (x @ weight.T + bias
               + (x @ lora_A.T @ lora_B.T) * (lora_alpha / r))
        ref = jax.block_until_ready(ref)

    assert out.shape == (batch, seq, out_features)
    assert jnp.allclose(out, ref, atol=1e-5, rtol=1e-5)

    print("KERNEL_OK")
</pallas_src>

<mosaic_0001>
module attributes {stable_mosaic.version = 11 : i64} {
  func.func @_lora_linear_kernel(%arg0: i32, %arg1: i32, %arg2: i32, %arg3: memref<16x128xf32, #tpu.memory_space<vmem>>, %arg4: memref<128x128xf32, #tpu.memory_space<vmem>>, %arg5: memref<1x128xf32, #tpu.memory_space<vmem>>, %arg6: memref<16x128xf32, #tpu.memory_space<vmem>>, %arg7: memref<128x128xf32, #tpu.memory_space<vmem>>, %arg8: memref<16x128xf32, #tpu.memory_space<vmem>>, %arg9: memref<16x128xf32, #tpu.memory_space<vmem>>) attributes {dimension_semantics = [#tpu.dimension_semantics<parallel>, #tpu.dimension_semantics<parallel>, #tpu.dimension_semantics<arbitrary>], iteration_bounds = array<i64: 1, 1, 1>, scalar_prefetch = 0 : i64, scratch_operands = 1 : i64, tpu.core_type = #tpu.core_type<tc>, window_params = [{transform_indices = @transform_0, window_bounds = array<i64: 16, 128>}, {transform_indices = @transform_1, window_bounds = array<i64: 128, 128>}, {transform_indices = @transform_2, window_bounds = array<i64: 1, 128>}, {transform_indices = @transform_3, window_bounds = array<i64: 16, 128>}, {transform_indices = @transform_4, window_bounds = array<i64: 128, 128>}, {transform_indices = @transform_5, window_bounds = array<i64: 16, 128>}]} {
    %c0_i32 = arith.constant 0 : i32
    %0 = arith.cmpi eq, %arg2, %c0_i32 : i32
    %1 = arith.extui %0 : i1 to i32
    %c0_i32_0 = arith.constant 0 : i32
    %2 = arith.cmpi ne, %1, %c0_i32_0 : i32
    scf.if %2 {
      %c0_10 = arith.constant 0 : index
      %c0_11 = arith.constant 0 : index
      %12 = vector.load %arg5[%c0_10, %c0_11] : memref<1x128xf32, #tpu.memory_space<vmem>>, vector<1x128xf32>
      %13 = vector.shape_cast %12 : vector<1x128xf32> to vector<1x128xf32>
      %14 = vector.broadcast %13 : vector<1x128xf32> to vector<16x128xf32>
      %c0_12 = arith.constant 0 : index
      %c0_13 = arith.constant 0 : index
      %15 = vector.load %arg9[%c0_12, %c0_13] : memref<16x128xf32, #tpu.memory_space<vmem>>, vector<16x128xf32>
      tpu.vector_store %arg9[%c0_12, %c0_13], %14 {strides = array<i32>} : memref<16x128xf32, #tpu.memory_space<vmem>>, vector<16x128xf32>,
    } else {
    }
    %c0 = arith.constant 0 : index
    %c0_1 = arith.constant 0 : index
    %3 = vector.load %arg9[%c0, %c0_1] : memref<16x128xf32, #tpu.memory_space<vmem>>, vector<16x128xf32>
    %c0_2 = arith.constant 0 : index
    %c0_3 = arith.constant 0 : index
    %4 = vector.load %arg3[%c0_2, %c0_3] : memref<16x128xf32, #tpu.memory_space<vmem>>, vector<16x128xf32>
    %c0_4 = arith.constant 0 : index
    %c0_5 = arith.constant 0 : index
    %5 = vector.load %arg4[%c0_4, %c0_5] : memref<128x128xf32, #tpu.memory_space<vmem>>, vector<128x128xf32>
    %cst = arith.constant dense<0.000000e+00> : vector<16x128xf32>
    %6 = tpu.matmul %4, %5, %cst {dimension_numbers = #tpu.dot_dimension_numbers<[1], [1], [0], [0], [0, 0, 1, 0], [], []>} : vector<16x128xf32>, vector<128x128xf32>, vector<16x128xf32> -> vector<16x128xf32>
    %7 = arith.addf %3, %6 : vector<16x128xf32>
    %c0_6 = arith.constant 0 : index
    %c0_7 = arith.constant 0 : index
    %8 = vector.load %arg9[%c0_6, %c0_7] : memref<16x128xf32, #tpu.memory_space<vmem>>, vector<16x128xf32>
    tpu.vector_store %arg9[%c0_6, %c0_7], %7 {strides = array<i32>} : memref<16x128xf32, #tpu.memory_space<vmem>>, vector<16x128xf32>,
    %c0_i32_8 = arith.constant 0 : i32
    %9 = arith.cmpi eq, %arg2, %c0_i32_8 : i32
    %10 = arith.extui %9 : i1 to i32
    %c0_i32_9 = arith.constant 0 : i32
    %11 = arith.cmpi ne, %10, %c0_i32_9 : i32
    scf.if %11 {
      %c0_10 = arith.constant 0 : index
      %c0_11 = arith.constant 0 : index
      %12 = vector.load %arg6[%c0_10, %c0_11] : memref<16x128xf32, #tpu.memory_space<vmem>>, vector<16x128xf32>
      %c0_12 = arith.constant 0 : index
      %c0_13 = arith.constant 0 : index
      %13 = vector.load %arg7[%c0_12, %c0_13] : memref<128x128xf32, #tpu.memory_space<vmem>>, vector<128x128xf32>
      %cst_14 = arith.constant dense<0.000000e+00> : vector<16x128xf32>
      %14 = tpu.matmul %12, %13, %cst_14 {dimension_numbers = #tpu.dot_dimension_numbers<[1], [1], [0], [0], [0, 0, 1, 0], [], []>} : vector<16x128xf32>, vector<128x128xf32>, vector<16x128xf32> -> vector<16x128xf32>
      %c0_15 = arith.constant 0 : index
      %c0_16 = arith.constant 0 : index
      %15 = vector.load %arg9[%c0_15, %c0_16] : memref<16x128xf32, #tpu.memory_space<vmem>>, vector<16x128xf32>
      %16 = arith.addf %15, %14 : vector<16x128xf32>
      %c0_17 = arith.constant 0 : index
      %c0_18 = arith.constant 0 : index
      %17 = vector.load %arg8[%c0_17, %c0_18] : memref<16x128xf32, #tpu.memory_space<vmem>>, vector<16x128xf32>
      tpu.vector_store %arg8[%c0_17, %c0_18], %16 {strides = array<i32>} : memref<16x128xf32, #tpu.memory_space<vmem>>, vector<16x128xf32>,
    } else {
    }
    return
  }
  func.func @transform_0(%arg0: i32, %arg1: i32, %arg2: i32) -> (i32, i32) {
    %c0_i32 = arith.constant 0 : i32
    return %arg0, %arg2 : i32, i32
  }
  func.func @transform_1(%arg0: i32, %arg1: i32, %arg2: i32) -> (i32, i32) {
    %c0_i32 = arith.constant 0 : i32
    return %arg1, %arg2 : i32, i32
  }
  func.func @transform_2(%arg0: i32, %arg1: i32, %arg2: i32) -> (i32, i32) {
    %c0_i32 = arith.constant 0 : i32
    %c0_i32_0 = arith.constant 0 : i32
    return %c0_i32, %arg1 : i32, i32
  }
  func.func @transform_3(%arg0: i32, %arg1: i32, %arg2: i32) -> (i32, i32) {
    %c0_i32 = arith.constant 0 : i32
    %c0_i32_0 = arith.constant 0 : i32
    return %arg0, %c0_i32 : i32, i32
  }
  func.func @transform_4(%arg0: i32, %arg1: i32, %arg2: i32) -> (i32, i32) {
    %c0_i32 = arith.constant 0 : i32
    %c0_i32_0 = arith.constant 0 : i32
    return %arg1, %c0_i32 : i32, i32
  }
  func.func @transform_5(%arg0: i32, %arg1: i32, %arg2: i32) -> (i32, i32) {
    %c0_i32 = arith.constant 0 : i32
    return %arg0, %arg1 : i32, i32
  }
}

</mosaic_0001>

<llo_original>
// kernel: tpu_custom_call.1
$region0: #{tpu_custom_call.1}
  #allocation0 [shape = 'u32[]', space=smem, size = 0x4, offset = 0x4, fixed_abs, tag = 'smem constant byte address 0x4 - core index']
  #allocation1 [shape = 'u32[144,128]{1,0:T(1,128)}', space=vmem, size = 0x12000, scoped, tag = 'internal scratch']
  #allocation2 [shape = 'f32[16,128]{1,0:T(8,128)}', space=vmem, size = 0x2000, scoped, tag = 'scratch operand']
  %s0 = inlined_call_operand.hbm [shape: f32[16,128], index: 0, kind: input, shape index: {}]
  %s1 = inlined_call_operand.hbm [shape: f32[128,128], index: 1, kind: input, shape index: {}]
  %s2 = inlined_call_operand.vmem [shape: f32[1,128], index: 2, kind: input, shape index: {}]
  %s3 = inlined_call_operand.hbm [shape: f32[16,128], index: 3, kind: input, shape index: {}]
  %s4 = inlined_call_operand.hbm [shape: f32[128,128], index: 4, kind: input, shape index: {}]
  %s5 = inlined_call_operand.hbm [shape: f32[16,128], index: 5, kind: output, shape index: {}]
  %s6 = sld [smem:[#allocation0]]
  $region54: #{tpu_custom_call.1} parent=0
    _
  %s8 = ssub.s32 1, %s6
  %s9 = scalar_select 0, %s8, %s6
  $region1: #{tpu_custom_call.1} parent=0
    #allocation3 [shape = 'u8[8192]{0}', space=vmem, size = 0x2000, scoped, tag = 'input window, operand 0, single buffered']
    #allocation4 [shape = 's32[1]{0}', space=sflag, size = 0x4, scoped, tag = 'scoped memory for tpu_custom_call.1']
    #allocation5 [shape = 's32[1]{0}', space=sflag, size = 0x4, scoped, tag = 'scoped memory for tpu_custom_call.1']
    #allocation6 [shape = 'u8[65536]{0}', space=vmem, size = 0x10000, scoped, tag = 'input window, operand 1, single buffered']
    #allocation7 [shape = 's32[1]{0}', space=sflag, size = 0x4, scoped, tag = 'scoped memory for tpu_custom_call.1']
    #allocation8 [shape = 'u8[8192]{0}', space=vmem, size = 0x2000, scoped, tag = 'input window, operand 3, single buffered']
    #allocation9 [shape = 'u8[65536]{0}', space=vmem, size = 0x10000, scoped, tag = 'input window, operand 4, single buffered']
    #allocation10 [shape = 's32[1]{0}', space=sflag, size = 0x4, scoped, tag = 'scoped memory for tpu_custom_call.1']
    #allocation11 [shape = 'u8[8192]{0}', space=vmem, size = 0x2000, scoped, tag = 'output window, operand 0, single buffered']
    %10 = vsyncpa [#allocation4], 0
    %11 = vsyncpa [#allocation7], 0
    %12 = vsyncpa [#allocation10], 0
    %13 = vsyncpa [#allocation5], 0
    // Predicated region
    $region2: #{tpu_custom_call.1} parent=1 // pred_check
      _
    $region3: #{tpu_custom_call.1} parent=1 // pred_check_branch
      %15 = sbr.rel (0) target = $region5
    $region4: #{tpu_custom_call.1} parent=1 // pred_region
      %s17 = ssub.s32 256, 256
      %18 = vsyncadd [#allocation4], %s17
      %s19 = sshll.u32 [#allocation3], 4
      %s20 = int_to_ptr.vmem [resolvable:$true] %s19
      %25 = dma.hbm_to_vmem [thread:$0]  %s0, 256, %s20, [#allocation4], 128, 128, 8
    $region5: #{tpu_custom_call.1} parent=1 // pred_fallthru
      _
    // Predicated region
    $region6: #{tpu_custom_call.1} parent=1 // pred_check
      _
    $region7: #{tpu_custom_call.1} parent=1 // pred_check_branch
      %27 = sbr.rel (0) target = $region9
    $region8: #{tpu_custom_call.1} parent=1 // pred_region
      %s29 = ssub.s32 2048, 2048
      %30 = vsyncadd [#allocation7], %s29
      %s31 = sshll.u32 [#allocation6], 4
      %s32 = int_to_ptr.vmem [resolvable:$true] %s31
      %37 = dma.hbm_to_vmem [thread:$0]  %s1, 2048, %s32, [#allocation7], 128, 128, 8
    $region9: #{tpu_custom_call.1} parent=1 // pred_fallthru
      _
    // Predicated region
    $region10: #{tpu_custom_call.1} parent=1 // pred_check
      _
    $region11: #{tpu_custom_call.1} parent=1 // pred_check_branch
      %39 = sbr.rel (0) target = $region13
    $region12: #{tpu_custom_call.1} parent=1 // pred_region
      _
    $region13: #{tpu_custom_call.1} parent=1 // pred_fallthru
      _
    // Predicated region
    $region14: #{tpu_custom_call.1} parent=1 // pred_check
      _
    $region15: #{tpu_custom_call.1} parent=1 // pred_check_branch
      %41 = sbr.rel (0) target = $region17
    $region16: #{tpu_custom_call.1} parent=1 // pred_region
      %s43 = ssub.s32 256, 256
      %44 = vsyncadd [#allocation7], %s43
      %s45 = sshll.u32 [#allocation8], 4
      %s46 = int_to_ptr.vmem [resolvable:$true] %s45
      %51 = dma.hbm_to_vmem [thread:$0]  %s3, 256, %s46, [#allocation7], 128, 128, 8
    $region17: #{tpu_custom_call.1} parent=1 // pred_fallthru
      _
    // Predicated region
    $region18: #{tpu_custom_call.1} parent=1 // pred_check
      _
    $region19: #{tpu_custom_call.1} parent=1 // pred_check_branch
      %53 = sbr.rel (0) target = $region21
    $region20: #{tpu_custom_call.1} parent=1 // pred_region
      %s55 = ssub.s32 2048, 2048
      %56 = vsyncadd [#allocation10], %s55
      %s57 = sshll.u32 [#allocation9], 4
      %s58 = int_to_ptr.vmem [resolvable:$true] %s57
      %63 = dma.hbm_to_vmem [thread:$0]  %s4, 2048, %s58, [#allocation10], 128, 128, 8
    $region21: #{tpu_custom_call.1} parent=1 // pred_fallthru
      _
    // Predicated region
    $region22: #{tpu_custom_call.1} parent=1 // pred_check
      _
    $region23: #{tpu_custom_call.1} parent=1 // pred_check_branch
      %65 = sbr.rel (0) target = $region25
    $region24: #{tpu_custom_call.1} parent=1 // pred_region
      %66 = dma.done [#allocation4], 256
    $region25: #{tpu_custom_call.1} parent=1 // pred_fallthru
      _
    // Predicated region
    $region26: #{tpu_custom_call.1} parent=1 // pred_check
      _
    $region27: #{tpu_custom_call.1} parent=1 // pred_check_branch
      %68 = sbr.rel (0) target = $region29
    $region28: #{tpu_custom_call.1} parent=1 // pred_region
      %69 = dma.done [#allocation7], 2048
    $region29: #{tpu_custom_call.1} parent=1 // pred_fallthru
      _
    // Predicated region
    $region30: #{tpu_custom_call.1} parent=1 // pred_check
      _
    $region31: #{tpu_custom_call.1} parent=1 // pred_check_branch
      %71 = sbr.rel (0) target = $region33
    $region32: #{tpu_custom_call.1} parent=1 // pred_region
      %72 = dma.done [#allocation7], 256
    $region33: #{tpu_custom_call.1} parent=1 // pred_fallthru
      _
    // Predicated region
    $region34: #{tpu_custom_call.1} parent=1 // pred_check
      _
    $region35: #{tpu_custom_call.1} parent=1 // pred_check_branch
      %74 = sbr.rel (0) target = $region37
    $region36: #{tpu_custom_call.1} parent=1 // pred_region
      %75 = dma.done [#allocation10], 2048
    $region37: #{tpu_custom_call.1} parent=1 // pred_fallthru
      _
    %p76 = scmp.eq.s32.totalorder 0, 0
    // Predicated region
    $region38: #{tpu_custom_call.1} parent=1 // pred_check
      %p77 = pneg %p76
    $region39: #{tpu_custom_call.1} parent=1 // pred_check_branch
      %79 = sbr.rel (%p77) target = $region41
    $region40: #{tpu_custom_call.1} parent=1 // pred_region
      %v80 = vld [vmem:[%s2] sm:$0x1]
      %v82 = vlaneseq
      %v83 = vshrl.u32 %v82, 7
      %v84 = vsub.s32 0, %v83
      %v85 = vrot.slane %v80, %v84
      %87 = vst [vmem:[#allocation2] sm:$0xff] %v85
      %88 = vst [vmem:[#allocation2 + $0x8] sm:$0xff] %v85
    $region41: #{tpu_custom_call.1} parent=1 // pred_fallthru
      _
    %v89 = vld [vmem:[#allocation2] sm:$0xff]
    %v90 = vld [vmem:[#allocation2 + $0x8] sm:$0xff]
    %v91 = vld [vmem:[#allocation3] sm:$0xff]
    %v92 = vld [vmem:[#allocation3 + $0x8] sm:$0xff]
    %v93 = vld [vmem:[#allocation6] sm:$0xff]
    %v94 = vld [vmem:[#allocation6 + $0x8] sm:$0xff]
    %v95 = vld [vmem:[#allocation6 + $0x10] sm:$0xff]
    %v96 = vld [vmem:[#allocation6 + $0x18] sm:$0xff]
    %v97 = vld [vmem:[#allocation6 + $0x20] sm:$0xff]
    %v98 = vld [vmem:[#allocation6 + $0x28] sm:$0xff]
    %v99 = vld [vmem:[#allocation6 + $0x30] sm:$0xff]
    %v100 = vld [vmem:[#allocation6 + $0x38] sm:$0xff]
    %v101 = vld [vmem:[#allocation6 + $0x40] sm:$0xff]
    %v102 = vld [vmem:[#allocation6 + $0x48] sm:$0xff]
    %v103 = vld [vmem:[#allocation6 + $0x50] sm:$0xff]
    %v104 = vld [vmem:[#allocation6 + $0x58] sm:$0xff]
    %v105 = vld [vmem:[#allocation6 + $0x60] sm:$0xff]
    %v106 = vld [vmem:[#allocation6 + $0x68] sm:$0xff]
    %v107 = vld [vmem:[#allocation6 + $0x70] sm:$0xff]
    %v108 = vld [vmem:[#allocation6 + $0x78] sm:$0xff]
    %109 = vmatprep.subr.mxu0 0.0
    %110 = vmatpush1.xpose.msra.mxu0 %v108
    %111 = vmatprep.subr.mxu0 0.0
    %112 = vmatpush1.xpose.msra.mxu0 %v107
    %113 = vmatprep.subr.mxu0 0.0
    %114 = vmatpush1.xpose.msra.mxu0 %v106
    %115 = vmatprep.subr.mxu0 0.0
    %116 = vmatpush1.xpose.msra.mxu0 %v105
    %117 = vmatprep.subr.mxu0 0.0
    %118 = vmatpush1.xpose.msra.mxu0 %v104
    %119 = vmatprep.subr.mxu0 0.0
    %120 = vmatpush1.xpose.msra.mxu0 %v103
    %121 = vmatprep.subr.mxu0 0.0
    %122 = vmatpush1.xpose.msra.mxu0 %v102
    %123 = vmatprep.subr.mxu0 0.0
    %124 = vmatpush1.xpose.msra.mxu0 %v101
    %125 = vmatprep.subr.mxu0 0.0
    %126 = vmatpush1.xpose.msra.mxu0 %v100
    %127 = vmatprep.subr.mxu0 0.0
    %128 = vmatpush1.xpose.msra.mxu0 %v99
    %129 = vmatprep.subr.mxu0 0.0
    %130 = vmatpush1.xpose.msra.mxu0 %v98
    %131 = vmatprep.subr.mxu0 0.0
    %132 = vmatpush1.xpose.msra.mxu0 %v97
    %133 = vmatprep.subr.mxu0 0.0
    %134 = vmatpush1.xpose.msra.mxu0 %v96
    %135 = vmatprep.subr.mxu0 0.0
    %136 = vmatpush1.xpose.msra.mxu0 %v95
    %137 = vmatprep.subr.mxu0 0.0
    %138 = vmatpush1.xpose.msra.mxu0 %v94
    %139 = vmatprep.subr.mxu0 0.0
    %140 = vmatpush1.xpose.msra.mxu0 %v93
    %141 = vmatprep.subr.mxu0 0.0
    %142 = vmatpush2.xpose.msra.mxu0 0.0
    %143 = vmatprep.subr.mxu0 0.0
    %144 = vmatpush2.xpose.msra.mxu0 0.0
    %145 = vmatprep.subr.mxu0 0.0
    %146 = vmatpush2.xpose.msra.mxu0 0.0
    %147 = vmatprep.subr.mxu0 0.0
    %148 = vmatpush2.xpose.msra.mxu0 0.0
    %149 = vmatprep.subr.mxu0 0.0
    %150 = vmatpush2.xpose.msra.mxu0 0.0
    %151 = vmatprep.subr.mxu0 0.0
    %152 = vmatpush2.xpose.msra.mxu0 0.0
    %153 = vmatprep.subr.mxu0 0.0
    %154 = vmatpush2.xpose.msra.mxu0 0.0
    %155 = vmatprep.subr.mxu0 0.0
    %156 = vmatpush2.xpose.msra.mxu0 0.0
    %157 = vmatprep.subr.mxu0 0.0
    %158 = vmatpush2.xpose.msra.mxu0 0.0
    %159 = vmatprep.subr.mxu0 0.0
    %160 = vmatpush2.xpose.msra.mxu0 0.0
    %161 = vmatprep.subr.mxu0 0.0
    %162 = vmatpush2.xpose.msra.mxu0 0.0
    %163 = vmatprep.subr.mxu0 0.0
    %164 = vmatpush2.xpose.msra.mxu0 0.0
    %165 = vmatprep.subr.mxu0 0.0
    %166 = vmatpush2.xpose.msra.mxu0 0.0
    %167 = vmatprep.subr.mxu0 0.0
    %168 = vmatpush2.xpose.msra.mxu0 0.0
    %169 = vmatprep.subr.mxu0 0.0
    %170 = vmatpush2.xpose.msra.mxu0 0.0
    %171 = vmatprep.subr.mxu0 0.0
    %172 = vmatpush2.xpose.msra.mxu0 0.0
    %173 = vmatprep.mubr.f32.mxu0 0.0
    %174 = vmatmul.mubr.f32.gmra.mxu0 %v91
    %v175 = vpop.f32.mrf.mxu0
    %v176 = vadd.f32 0.0, %v175
    %v177 = vpop.f32.mrf.mxu0
    %178 = vmatprep.mubr.f32.mxu0 0.0
    %179 = vmatmul.mubr.f32.gmra.mxu0 %v92
    %v180 = vpop.f32.mrf.mxu0
    %v181 = vadd.f32 0.0, %v180
    %v182 = vpop.f32.mrf.mxu0
    %183 = vdwg.mxu0
    %v184 = vadd.f32 %v89, %v176
    %v185 = vadd.f32 %v90, %v181
    %186 = vst [vmem:[#allocation2] sm:$0xff] %v184
    %187 = vst [vmem:[#allocation2 + $0x8] sm:$0xff] %v185
    // Predicated region
    $region42: #{tpu_custom_call.1} parent=1 // pred_check
      %p188 = pneg %p76
    $region43: #{tpu_custom_call.1} parent=1 // pred_check_branch
      %190 = sbr.rel (%p188) target = $region45
    $region44: #{tpu_custom_call.1} parent=1 // pred_region
      %v191 = vld [vmem:[#allocation8] sm:$0xff]
      %v192 = vld [vmem:[#allocation8 + $0x8] sm:$0xff]
      %v193 = vld [vmem:[#allocation9] sm:$0xff]
      %v194 = vld [vmem:[#allocation9 + $0x8] sm:$0xff]
      %v195 = vld [vmem:[#allocation9 + $0x10] sm:$0xff]
      %v196 = vld [vmem:[#allocation9 + $0x18] sm:$0xff]
      %v197 = vld [vmem:[#allocation9 + $0x20] sm:$0xff]
      %v198 = vld [vmem:[#allocation9 + $0x28] sm:$0xff]
      %v199 = vld [vmem:[#allocation9 + $0x30] sm:$0xff]
      %v200 = vld [vmem:[#allocation9 + $0x38] sm:$0xff]
      %v201 = vld [vmem:[#allocation9 + $0x40] sm:$0xff]
      %v202 = vld [vmem:[#allocation9 + $0x48] sm:$0xff]
      %v203 = vld [vmem:[#allocation9 + $0x50] sm:$0xff]
      %v204 = vld [vmem:[#allocation9 + $0x58] sm:$0xff]
      %v205 = vld [vmem:[#allocation9 + $0x60] sm:$0xff]
      %v206 = vld [vmem:[#allocation9 + $0x68] sm:$0xff]
      %v207 = vld [vmem:[#allocation9 + $0x70] sm:$0xff]
      %v208 = vld [vmem:[#allocation9 + $0x78] sm:$0xff]
      %209 = vmatprep.subr.mxu0 0.0
      %210 = vmatpush1.xpose.msra.mxu0 %v208
      %211 = vmatprep.subr.mxu0 0.0
      %212 = vmatpush1.xpose.msra.mxu0 %v207
      %213 = vmatprep.subr.mxu0 0.0
      %214 = vmatpush1.xpose.msra.mxu0 %v206
      %215 = vmatprep.subr.mxu0 0.0
      %216 = vmatpush1.xpose.msra.mxu0 %v205
      %217 = vmatprep.subr.mxu0 0.0
      %218 = vmatpush1.xpose.msra.mxu0 %v204
      %219 = vmatprep.subr.mxu0 0.0
      %220 = vmatpush1.xpose.msra.mxu0 %v203
      %221 = vmatprep.subr.mxu0 0.0
      %222 = vmatpush1.xpose.msra.mxu0 %v202
      %223 = vmatprep.subr.mxu0 0.0
      %224 = vmatpush1.xpose.msra.mxu0 %v201
      %225 = vmatprep.subr.mxu0 0.0
      %226 = vmatpush1.xpose.msra.mxu0 %v200
      %227 = vmatprep.subr.mxu0 0.0
      %228 = vmatpush1.xpose.msra.mxu0 %v199
      %229 = vmatprep.subr.mxu0 0.0
      %230 = vmatpush1.xpose.msra.mxu0 %v198
      %231 = vmatprep.subr.mxu0 0.0
      %232 = vmatpush1.xpose.msra.mxu0 %v197
      %233 = vmatprep.subr.mxu0 0.0
      %234 = vmatpush1.xpose.msra.mxu0 %v196
      %235 = vmatprep.subr.mxu0 0.0
      %236 = vmatpush1.xpose.msra.mxu0 %v195
      %237 = vmatprep.subr.mxu0 0.0
      %238 = vmatpush1.xpose.msra.mxu0 %v194
      %239 = vmatprep.subr.mxu0 0.0
      %240 = vmatpush1.xpose.msra.mxu0 %v193
      %241 = vmatprep.subr.mxu0 0.0
      %242 = vmatpush2.xpose.msra.mxu0 0.0
      %243 = vmatprep.subr.mxu0 0.0
      %244 = vmatpush2.xpose.msra.mxu0 0.0
      %245 = vmatprep.subr.mxu0 0.0
      %246 = vmatpush2.xpose.msra.mxu0 0.0
      %247 = vmatprep.subr.mxu0 0.0
      %248 = vmatpush2.xpose.msra.mxu0 0.0
      %249 = vmatprep.subr.mxu0 0.0
      %250 = vmatpush2.xpose.msra.mxu0 0.0
      %251 = vmatprep.subr.mxu0 0.0
      %252 = vmatpush2.xpose.msra.mxu0 0.0
      %253 = vmatprep.subr.mxu0 0.0
      %254 = vmatpush2.xpose.msra.mxu0 0.0
      %255 = vmatprep.subr.mxu0 0.0
      %256 = vmatpush2.xpose.msra.mxu0 0.0
      %257 = vmatprep.subr.mxu0 0.0
      %258 = vmatpush2.xpose.msra.mxu0 0.0
      %259 = vmatprep.subr.mxu0 0.0
      %260 = vmatpush2.xpose.msra.mxu0 0.0
      %261 = vmatprep.subr.mxu0 0.0
      %262 = vmatpush2.xpose.msra.mxu0 0.0
      %263 = vmatprep.subr.mxu0 0.0
      %264 = vmatpush2.xpose.msra.mxu0 0.0
      %265 = vmatprep.subr.mxu0 0.0
      %266 = vmatpush2.xpose.msra.mxu0 0.0
      %267 = vmatprep.subr.mxu0 0.0
      %268 = vmatpush2.xpose.msra.mxu0 0.0
      %269 = vmatprep.subr.mxu0 0.0
      %270 = vmatpush2.xpose.msra.mxu0 0.0
      %271 = vmatprep.subr.mxu0 0.0
      %272 = vmatpush2.xpose.msra.mxu0 0.0
      %273 = vmatprep.mubr.f32.mxu0 0.0
      %274 = vmatmul.mubr.f32.gmra.mxu0 %v191
      %v275 = vpop.f32.mrf.mxu0
      %v276 = vadd.f32 0.0, %v275
      %v277 = vpop.f32.mrf.mxu0
      %278 = vmatprep.mubr.f32.mxu0 0.0
      %279 = vmatmul.mubr.f32.gmra.mxu0 %v192
      %v280 = vpop.f32.mrf.mxu0
      %v281 = vadd.f32 0.0, %v280
      %v282 = vpop.f32.mrf.mxu0
      %283 = vdwg.mxu0
      %v284 = vld [vmem:[#allocation2] sm:$0xff]
      %v285 = vld [vmem:[#allocation2 + $0x8] sm:$0xff]
      %v286 = vadd.f32 %v284, %v276
      %v287 = vadd.f32 %v285, %v281
      %288 = vst [vmem:[#allocation11] sm:$0xff] %v286
      %289 = vst [vmem:[#allocation11 + $0x8] sm:$0xff] %v287
    $region45: #{tpu_custom_call.1} parent=1 // pred_fallthru
      _
    // Predicated region
    $region46: #{tpu_custom_call.1} parent=1 // pred_check
      _
    $region47: #{tpu_custom_call.1} parent=1 // pred_check_branch
      %291 = sbr.rel (0) target = $region49
    $region48: #{tpu_custom_call.1} parent=1 // pred_region
      %s293 = ssub.s32 256, 256
      %294 = vsyncadd [#allocation5], %s293
      %s295 = sshll.u32 [#allocation11], 4
      %s296 = int_to_ptr.vmem [resolvable:$true] %s295
      %301 = dma.vmem_to_hbm [thread:$0]  %s296, 256, %s5, [#allocation5], 128, 128, 8
    $region49: #{tpu_custom_call.1} parent=1 // pred_fallthru
      _
    // Predicated region
    $region50: #{tpu_custom_call.1} parent=1 // pred_check
      _
    $region51: #{tpu_custom_call.1} parent=1 // pred_check_branch
      %303 = sbr.rel (0) target = $region53
    $region52: #{tpu_custom_call.1} parent=1 // pred_region
      %304 = dma.done [#allocation5], 256
    $region53: #{tpu_custom_call.1} parent=1 // pred_fallthru
      _
    %305 = vsyncpa [#allocation4], 1
    %306 = vsyncpa [#allocation7], 1
    %307 = vsyncpa [#allocation10], 1
    %308 = vsyncpa [#allocation5], 1

</llo_original>
